<compile_context>
chip_gen: v7x
topology: tpu7x:2x2x1
jax: 0.10.0
libtpu: 0.0.40
codegen_flags: <defaults>
</compile_context>

<pallas_src>
import jax
import jax.numpy as jnp
from jax.experimental import pallas as pl
from jax.experimental.pallas import tpu as pltpu

_LANE = 128


def _hsigmoid_kernel(x_ref, o_ref):
    x = x_ref[...].astype(jnp.float32)
    # relu6(x + 3) / 6  ==  clip(x + 3, 0, 6) * (1/6)
    o_ref[...] = (jnp.clip(x + 3.0, 0.0, 6.0) * (1.0 / 6.0)).astype(o_ref.dtype)


def _cdiv(a: int, b: int) -> int:
    return (a + b - 1) // b


def _round_up(a: int, b: int) -> int:
    return _cdiv(a, b) * b


def _chip_params():
    """(num_tensorcores_per_device, target_block_bytes, vmem_limit_bytes)."""
    kind = ""
    try:
        kind = (jax.devices()[0].device_kind or "").lower()
    except Exception:
        pass
    if "v7" in kind or "tpu7" in kind:
        num_tc, target, vmem = 2, 6 << 20, 40 << 20       # 2 TCs, 3.2 TB/s HBM
    elif "v6" in kind:
        num_tc, target, vmem = 1, 4 << 20, 48 << 20       # 128 MiB physical VMEM
    elif "v5p" in kind:
        num_tc, target, vmem = 2, 4 << 20, 48 << 20       # megacore
    elif "v5" in kind:                                    # v5e / v5 lite
        num_tc, target, vmem = 1, 2 << 20, 32 << 20
    else:
        num_tc, target, vmem = 1, 2 << 20, None           # unknown: stay conservative
    # Clamp against the actual VMEM capacity if the query is available.
    try:
        cap = int(pltpu.get_tpu_info().vmem_capacity_bytes)
        if vmem is not None and cap > 0:
            vmem = min(vmem, cap * 3 // 4)
    except Exception:
        pass
    return num_tc, target, vmem


def _pick_block_rows(rows: int, row_bytes: int, sub: int,
                     target_block_bytes: int, num_tc: int) -> int:
    """Rows per block: ~target_block_bytes, a multiple of `sub` (or == rows)."""
    br0 = max(sub, (target_block_bytes // row_bytes) // sub * sub)

    if num_tc <= 1 or rows < 2 * sub:
        # Sequential grid (single TC) or too small to split: one block if it
        # fits the target, otherwise bandwidth-optimal blocks (ragged tail ok).
        return rows if rows <= br0 else br0

    # Two TensorCores share the "parallel" grid axis (contiguous halves):
    # pick an even, balanced block count with blocks near (<=1.5x) the target.
    br_cap = max(br0, (target_block_bytes * 3 // 2) // row_bytes // sub * sub)
    overhead_rows = max(sub, br0 // 16)            # ~0.35 us/step, in row units
    g_base = 2 * max(1, _cdiv(rows, 2 * br0))      # even count near target size
    best_br, best_cost = None, None
    for g in sorted({2, g_base, g_base + 2}):
        br = max(sub, _round_up(_cdiv(rows, g), sub))
        if br > br_cap:
            continue                               # g_base always satisfies the cap
        g_real = _cdiv(rows, br)
        c0_rows = min(_cdiv(g_real, 2) * br, rows)  # busier core's share
        busy_rows = max(c0_rows, rows - c0_rows)
        cost = busy_rows + _cdiv(g_real, 2) * overhead_rows
        if best_cost is None or cost < best_cost:
            best_br, best_cost = br, cost
    return best_br


def _hsigmoid_xla(x: jax.Array) -> jax.Array:
    y = jnp.clip(x.astype(jnp.float32) + 3.0, 0.0, 6.0) * (1.0 / 6.0)
    return y.astype(x.dtype)


def _hsigmoid_pallas(x: jax.Array, num_tc: int, target_block_bytes: int,
                     vmem_limit_bytes) -> jax.Array:
    orig_shape = x.shape
    dtype = x.dtype
    n = x.size
    itemsize = jnp.dtype(dtype).itemsize
    # dtype-aware sublane multiple: 8 (f32), 16 (bf16/f16)
    sub = max(8, 32 // itemsize)

    # Lane-dense slab: widest multiple of 128 dividing n, capped at 4096.
    W = _LANE
    for cand in (4096, 2048, 1024, 512, 256):
        if n % cand == 0:
            W = cand
            break
    rows = n // W
    x2d = x.reshape(rows, W)                      # contiguous -> free

    br = _pick_block_rows(rows, W * itemsize, sub, target_block_bytes, num_tc)
    grid = (pl.cdiv(rows, br),)                   # ragged last block masked by Pallas

    out2d = pl.pallas_call(
        _hsigmoid_kernel,
        out_shape=jax.ShapeDtypeStruct((rows, W), dtype),
        grid_spec=pltpu.PrefetchScalarGridSpec(
            num_scalar_prefetch=0,
            grid=grid,
            in_specs=[pl.BlockSpec((br, W), lambda i: (i, 0))],
            out_specs=pl.BlockSpec((br, W), lambda i: (i, 0)),
        ),
        compiler_params=pltpu.CompilerParams(
            dimension_semantics=("parallel",),
            vmem_limit_bytes=vmem_limit_bytes,
        ),
    )(x2d)
    return out2d.reshape(orig_shape)


def hsigmoid(x: jax.Array, *, target_block_bytes: int | None = None,
             min_kernel_bytes: int = 1 << 19) -> jax.Array:
    """Hard sigmoid relu6(x + 3) / 6 via a bandwidth-tuned Pallas TPU kernel.

    Tiny inputs, ragged element counts (n % 128 != 0), and integer dtypes use
    the fused XLA path (already at HBM roofline for this trivial op).
    """
    n = x.size
    if n == 0:
        return x
    if not jnp.issubdtype(x.dtype, jnp.floating):
        # PyTorch promotion: int tensor + 3.0 -> float32 result.
        return _hsigmoid_xla(x.astype(jnp.float32))

    num_tc, auto_target, vmem_limit = _chip_params()
    if target_block_bytes is None:
        target_block_bytes = auto_target

    small = n * jnp.dtype(x.dtype).itemsize < min_kernel_bytes
    ragged = (n % _LANE) != 0
    if small or ragged:
        return _hsigmoid_xla(x)
    return _hsigmoid_pallas(x, num_tc, target_block_bytes, vmem_limit)


if __name__ == "__main__":
    key = jax.random.PRNGKey(0)
    k1, k2, k3, k4 = jax.random.split(key, 4)

    def ref(x):
        return jnp.clip(x.astype(jnp.float32) + 3.0, 0.0, 6.0) / 6.0

    # 1) Spec shape (NCHW, batch=2, channels=4, spatial=16), forced through the kernel.
    x1 = jax.random.normal(k1, (2, 4, 16, 16), dtype=jnp.float32) * 4.0
    y1 = jax.block_until_ready(hsigmoid(x1, min_kernel_bytes=0))
    assert y1.shape == x1.shape and y1.dtype == x1.dtype
    assert jnp.allclose(y1, ref(x1), atol=1e-6), "mismatch (f32 spec shape)"

    # 2) Ragged element count (n % 128 != 0): routed to the roofline XLA path.
    x2 = jax.random.normal(k2, (3, 5, 7, 11), dtype=jnp.float32) * 4.0
    y2 = jax.block_until_ready(hsigmoid(x2, min_kernel_bytes=0))
    assert jnp.allclose(y2, ref(x2), atol=1e-6), "mismatch (ragged shape)"

    # 3) Larger tensor through the default path (multi-block / balanced grid).
    x3 = jax.random.normal(k3, (2, 16, 64, 64), dtype=jnp.float32) * 4.0
    y3 = jax.block_until_ready(hsigmoid(x3))
    assert jnp.allclose(y3, ref(x3), atol=1e-6), "mismatch (multi-block)"

    # 4) bf16 input: dtype-aware sublane multiple (16), single full-array block.
    x4 = (jax.random.normal(k4, (2, 8, 32, 32), dtype=jnp.float32) * 4.0).astype(jnp.bfloat16)
    y4 = jax.block_until_ready(hsigmoid(x4, min_kernel_bytes=0))
    assert y4.dtype == jnp.bfloat16
    assert jnp.allclose(y4.astype(jnp.float32), ref(x4), atol=1e-2), "mismatch (bf16)"

    # 5) Integer dtype: follows PyTorch promotion (result is float32).
    x5 = jnp.arange(-6, 10, dtype=jnp.int32).reshape(4, 4)
    y5 = jax.block_until_ready(hsigmoid(x5))
    assert y5.dtype == jnp.float32
    assert jnp.allclose(y5, ref(x5), atol=1e-6), "mismatch (int input)"

    print("KERNEL_OK")
</pallas_src>

<mosaic_0001>
module attributes {stable_mosaic.version = 11 : i64} {
  func.func @_hsigmoid_kernel(%arg0: i32, %arg1: memref<1x2048xf32, #tpu.memory_space<vmem>>, %arg2: memref<1x2048xf32, #tpu.memory_space<vmem>>) attributes {dimension_semantics = [#tpu.dimension_semantics<parallel>], iteration_bounds = array<i64: 1>, scalar_prefetch = 0 : i64, scratch_operands = 0 : i64, tpu.core_type = #tpu.core_type<tc>, window_params = [{transform_indices = @transform_0, window_bounds = array<i64: 1, 2048>}, {transform_indices = @transform_1, window_bounds = array<i64: 1, 2048>}]} {
    %c0 = arith.constant 0 : index
    %c0_0 = arith.constant 0 : index
    %0 = vector.load %arg1[%c0, %c0_0] : memref<1x2048xf32, #tpu.memory_space<vmem>>, vector<1x2048xf32>
    %cst = arith.constant 3.000000e+00 : f32
    %1 = vector.broadcast %cst : f32 to vector<1x2048xf32>
    %2 = arith.addf %0, %1 : vector<1x2048xf32>
    %cst_1 = arith.constant 0.000000e+00 : f32
    %cst_2 = arith.constant 6.000000e+00 : f32
    %3 = vector.broadcast %cst_1 : f32 to vector<1x2048xf32>
    %4 = arith.maximumf %3, %2 : vector<1x2048xf32>
    %5 = vector.broadcast %cst_2 : f32 to vector<1x2048xf32>
    %6 = arith.minimumf %5, %4 : vector<1x2048xf32>
    %cst_3 = arith.constant 0.166666672 : f32
    %7 = vector.broadcast %cst_3 : f32 to vector<1x2048xf32>
    %8 = arith.mulf %6, %7 : vector<1x2048xf32>
    %c0_4 = arith.constant 0 : index
    %c0_5 = arith.constant 0 : index
    %9 = vector.load %arg2[%c0_4, %c0_5] : memref<1x2048xf32, #tpu.memory_space<vmem>>, vector<1x2048xf32>
    tpu.vector_store %arg2[%c0_4, %c0_5], %8 {strides = array<i32>} : memref<1x2048xf32, #tpu.memory_space<vmem>>, vector<1x2048xf32>,
    return
  }
  func.func @transform_0(%arg0: i32) -> (i32, i32) {
    %c0_i32 = arith.constant 0 : i32
    %c0_i32_0 = arith.constant 0 : i32
    return %arg0, %c0_i32 : i32, i32
  }
  func.func @transform_1(%arg0: i32) -> (i32, i32) {
    %c0_i32 = arith.constant 0 : i32
    %c0_i32_0 = arith.constant 0 : i32
    return %arg0, %c0_i32 : i32, i32
  }
}

</mosaic_0001>

<llo_original>
// kernel: tpu_custom_call.1
$region0: #{tpu_custom_call.1}
  #allocation0 [shape = 'u32[]', space=smem, size = 0x4, offset = 0x4, fixed_abs, tag = 'smem constant byte address 0x4 - core index']
  #allocation1 [shape = 'u32[144,128]{1,0:T(1,128)}', space=vmem, size = 0x12000, scoped, tag = 'internal scratch']
  %s0 = inlined_call_operand.hbm [shape: f32[1,2048], index: 0, kind: input, shape index: {}]
  %s1 = inlined_call_operand.hbm [shape: f32[1,2048], index: 1, kind: output, shape index: {}]
  %s2 = sld [smem:[#allocation0]]
  $region18: #{tpu_custom_call.1} parent=0
    _
  %s4 = ssub.s32 1, %s2
  %s5 = scalar_select 0, %s4, %s2
  $region1: #{tpu_custom_call.1} parent=0
    #allocation2 [shape = 'u8[8192]{0}', space=vmem, size = 0x2000, scoped, tag = 'input window, operand 0, single buffered']
    #allocation3 [shape = 's32[1]{0}', space=sflag, size = 0x4, scoped, tag = 'scoped memory for tpu_custom_call.1']
    #allocation4 [shape = 's32[1]{0}', space=sflag, size = 0x4, scoped, tag = 'scoped memory for tpu_custom_call.1']
    #allocation5 [shape = 'u8[8192]{0}', space=vmem, size = 0x2000, scoped, tag = 'output window, operand 0, single buffered']
    %6 = vsyncpa [#allocation3], 0
    %7 = vsyncpa [#allocation4], 0
    // Predicated region
    $region2: #{tpu_custom_call.1} parent=1 // pred_check
      _
    $region3: #{tpu_custom_call.1} parent=1 // pred_check_branch
      %9 = sbr.rel (0) target = $region5
    $region4: #{tpu_custom_call.1} parent=1 // pred_region
      %s11 = ssub.s32 256, 256
      %12 = vsyncadd [#allocation3], %s11
      %s14 = sshll.u32 [#allocation2], 4
      %s15 = int_to_ptr.vmem [resolvable:$true] %s14
      %17 = dma.hbm_to_vmem [thread:$0]  %s0, 256, %s15, [#allocation3]
    $region5: #{tpu_custom_call.1} parent=1 // pred_fallthru
      _
    // Predicated region
    $region6: #{tpu_custom_call.1} parent=1 // pred_check
      _
    $region7: #{tpu_custom_call.1} parent=1 // pred_check_branch
      %19 = sbr.rel (0) target = $region9
    $region8: #{tpu_custom_call.1} parent=1 // pred_region
      %20 = dma.done [#allocation3], 256
    $region9: #{tpu_custom_call.1} parent=1 // pred_fallthru
      _
    %v21 = vld [vmem:[#allocation2] sm:$0xff]
    %v22 = vld [vmem:[#allocation2 + $0x8] sm:$0xff]
    %v23 = vadd.f32 %v21, 3.0
    %v24 = vadd.f32 %v22, 3.0
    %v25 = vmax.f32 %v23, 0.0
    %v26 = vmax.f32 %v24, 0.0
    %v27 = vmin.f32 %v25, 6.0
    %v28 = vmin.f32 %v26, 6.0
    %v29 = vmul.f32 %v27, 0.16666667
    %v30 = vmul.f32 %v28, 0.16666667
    %31 = vst [vmem:[#allocation5] sm:$0xff] %v29
    %32 = vst [vmem:[#allocation5 + $0x8] sm:$0xff] %v30
    // Predicated region
    $region10: #{tpu_custom_call.1} parent=1 // pred_check
      _
    $region11: #{tpu_custom_call.1} parent=1 // pred_check_branch
      %34 = sbr.rel (0) target = $region13
    $region12: #{tpu_custom_call.1} parent=1 // pred_region
      %s36 = ssub.s32 256, 256
      %37 = vsyncadd [#allocation4], %s36
      %s39 = sshll.u32 [#allocation5], 4
      %s40 = int_to_ptr.vmem [resolvable:$true] %s39
      %42 = dma.vmem_to_hbm [thread:$0]  %s40, 256, %s1, [#allocation4]
    $region13: #{tpu_custom_call.1} parent=1 // pred_fallthru
      _
    // Predicated region
    $region14: #{tpu_custom_call.1} parent=1 // pred_check
      _
    $region15: #{tpu_custom_call.1} parent=1 // pred_check_branch
      %44 = sbr.rel (0) target = $region17
    $region16: #{tpu_custom_call.1} parent=1 // pred_region
      %45 = dma.done [#allocation4], 256
    $region17: #{tpu_custom_call.1} parent=1 // pred_fallthru
      _
    %46 = vsyncpa [#allocation3], 1
    %47 = vsyncpa [#allocation4], 1

</llo_original>
